<compile_context>
chip_gen: v5e
topology: v5e:2x2
jax: 0.10.0
libtpu: 0.0.40
codegen_flags: <defaults>
</compile_context>

<pallas_src>
import functools

import jax
import jax.numpy as jnp
from jax import lax
from jax.experimental import pallas as pl
from jax.experimental.pallas import tpu as pltpu

H = 32        # hidden size
G = 4 * H     # 128 gate lanes (i, f, g, o): one (8,128) f32 vreg per 8 batch rows


def lstm_kernel(x_ref, w_ih_ref, w_hh_ref, b_ref, fc_w_ref, fc_b_ref, out_ref,
                gx_ref, *, batch_block, seq, unroll):
    bb = batch_block

    # Precompute the input->gate projection for the whole block OFF the serial
    # critical path:  gx[t] = x[t] * W_ih^T + (b_ih + b_hh).
    # (T, bb, 1) * (1, G) + (1, G) -> (T, bb, G) stored to VMEM scratch.
    gx_ref[...] = x_ref[...] * w_ih_ref[...] + b_ref[...]

    # Hoist the recurrent weight load once; operands may be bf16 (MXU-native),
    # accumulation/result stay f32 via preferred_element_type.
    w_hh = w_hh_ref[...]                                   # (H, 4H)
    lhs_dtype = w_hh.dtype

    def step(t, carry):
        h, c = carry
        gx = gx_ref[t]                                     # (bb, 4H): one vld
        gh = jnp.dot(h.astype(lhs_dtype), w_hh,
                     preferred_element_type=jnp.float32)   # (bb, 4H) on the MXU
        gates = gh + gx                                    # one full vreg per 8 rows

        # Two full-vreg EUP passes instead of four quarter-vreg ones.
        sg = jax.nn.sigmoid(gates)
        th = jnp.tanh(gates)
        i = sg[:, 0:H]
        f = sg[:, H:2 * H]
        g = th[:, 2 * H:3 * H]
        o = sg[:, 3 * H:4 * H]

        c_new = f * c + i * g
        h_new = o * jnp.tanh(c_new)
        return h_new, c_new

    h0 = jnp.zeros((bb, H), jnp.float32)
    c0 = jnp.zeros((bb, H), jnp.float32)
    h_last, _ = lax.fori_loop(0, seq, step, (h0, c0), unroll=unroll)

    # fc(out[:, -1]) on the VPU/XLU: (bb,H) * (1,H) -> lane reduce -> (bb,1).
    # Avoids a full MXU spin-up/drain for a single output lane.
    out_ref[...] = (jnp.sum(h_last * fc_w_ref[...], axis=-1, keepdims=True)
                    + fc_b_ref[...])


def lstm_net_forward(x, params, *, batch_block=None, unroll=None,
                     mxu_dtype=jnp.bfloat16, core_parallel=False):
    """x: (B, T, 1) float32, batch_first like PyTorch. Returns (B, 1).

    batch_block: rows per grid step.  Default B (nb=1, single block) -- correct
      choice on v5e/v6e where the grid is a serial loop on one TensorCore.
      On v7x pass batch_block=B//2 (requires B % 16 == 0) and core_parallel=True
      so the 2-step batch axis is sharded across both TensorCores.
    mxu_dtype: dtype of the recurrent-matmul operands (bf16 default; pass
      jnp.float32 for a bit-tighter match to an f32 reference).
    """
    B, T, F = x.shape
    assert F == 1 and B % 8 == 0
    if batch_block is None:
        batch_block = B
    assert batch_block % 8 == 0 and B % batch_block == 0
    if unroll is None:
        if batch_block >= 128:
            unroll = 4               # cap unroll at large bb to bound vreg pressure
        elif T <= 16:
            unroll = True            # full unroll for short sequences
        else:
            unroll = 8

    # Time-major (T, B, 1): each timestep is a contiguous (B, 1) sublane block.
    x_tm = jnp.transpose(x, (1, 0, 2)).astype(jnp.float32)

    w_ih = params["w_ih"].T.astype(jnp.float32)                       # (1, 4H)
    w_hh = params["w_hh"].T.astype(mxu_dtype)                         # (H, 4H)
    b = (params["b_ih"] + params["b_hh"]).reshape(1, G).astype(jnp.float32)
    fc_w = params["fc_w"].astype(jnp.float32)                         # (1, H) row
    fc_b = params["fc_b"].reshape(1, 1).astype(jnp.float32)           # (1, 1)

    kernel = functools.partial(lstm_kernel, batch_block=batch_block,
                               seq=T, unroll=unroll)
    nb = B // batch_block
    dim_sem = (pltpu.CORE_PARALLEL,) if (core_parallel and nb > 1) else ("parallel",)

    return pl.pallas_call(
        kernel,
        out_shape=jax.ShapeDtypeStruct((B, 1), jnp.float32),
        grid_spec=pltpu.PrefetchScalarGridSpec(
            num_scalar_prefetch=0,
            grid=(nb,),
            in_specs=[
                pl.BlockSpec((T, batch_block, 1), lambda j: (0, j, 0)),  # x time-major
                pl.BlockSpec((1, G), lambda j: (0, 0)),                  # W_ih^T
                pl.BlockSpec((H, G), lambda j: (0, 0)),                  # W_hh^T
                pl.BlockSpec((1, G), lambda j: (0, 0)),                  # b_ih + b_hh
                pl.BlockSpec((1, H), lambda j: (0, 0)),                  # W_fc row
                pl.BlockSpec((1, 1), lambda j: (0, 0)),                  # b_fc
            ],
            out_specs=pl.BlockSpec((batch_block, 1), lambda j: (j, 0)),
            scratch_shapes=[
                pltpu.VMEM((T, batch_block, G), jnp.float32),            # gx scratch
            ],
        ),
        compiler_params=pltpu.CompilerParams(dimension_semantics=dim_sem),
    )(x_tm, w_ih, w_hh, b, fc_w, fc_b)


def lstm_net_ref(x, params):
    """Pure-JAX reference matching torch.nn.LSTM + Linear semantics."""
    B, T, _ = x.shape
    w_ih, w_hh = params["w_ih"], params["w_hh"]
    b = params["b_ih"] + params["b_hh"]
    h = jnp.zeros((B, H), jnp.float32)
    c = jnp.zeros((B, H), jnp.float32)
    for t in range(T):
        gates = x[:, t] @ w_ih.T + h @ w_hh.T + b
        i = jax.nn.sigmoid(gates[:, 0:H])
        f = jax.nn.sigmoid(gates[:, H:2 * H])
        g = jnp.tanh(gates[:, 2 * H:3 * H])
        o = jax.nn.sigmoid(gates[:, 3 * H:4 * H])
        c = f * c + i * g
        h = o * jnp.tanh(c)
    return h @ params["fc_w"].T + params["fc_b"]


def init_params(key):
    # Same shapes as torch.nn.LSTM(1, 32) + torch.nn.Linear(32, 1);
    # uniform(-1/sqrt(H), 1/sqrt(H)) like PyTorch defaults.
    k = 1.0 / jnp.sqrt(jnp.float32(H))
    keys = jax.random.split(key, 6)
    u = lambda kk, shape: jax.random.uniform(kk, shape, jnp.float32, -k, k)
    return {
        "w_ih": u(keys[0], (G, 1)),     # weight_ih_l0
        "w_hh": u(keys[1], (G, H)),     # weight_hh_l0
        "b_ih": u(keys[2], (G,)),       # bias_ih_l0
        "b_hh": u(keys[3], (G,)),       # bias_hh_l0
        "fc_w": u(keys[4], (1, H)),     # fc.weight
        "fc_b": u(keys[5], (1,)),       # fc.bias
    }


if __name__ == "__main__":
    key = jax.random.PRNGKey(0)
    kx, kp = jax.random.split(key)

    B, T = 8, 8
    x = jax.random.normal(kx, (B, T, 1), jnp.float32)
    params = init_params(kp)

    ref = lstm_net_ref(x, params)

    # Exact path: f32 MXU operands, tight match against the f32 reference.
    out_f32 = jax.block_until_ready(
        lstm_net_forward(x, params, mxu_dtype=jnp.float32))
    assert out_f32.shape == (B, 1)
    assert jnp.max(jnp.abs(out_f32 - ref)) < 1e-4, "f32 path mismatch vs reference"

    # Fast path (default): bf16 operands for the recurrent dot only; elementwise
    # math stays f32.  bf16 rounding compounds over T steps -> looser tolerance.
    out_bf16 = jax.block_until_ready(lstm_net_forward(x, params))
    assert out_bf16.shape == (B, 1)
    assert jnp.max(jnp.abs(out_bf16 - ref)) < 5e-2, "bf16 path mismatch vs reference"

    print("KERNEL_OK")
</pallas_src>

<mosaic_0001>
module attributes {stable_mosaic.version = 11 : i64} {
  func.func @lstm_kernel(%arg0: i32, %arg1: memref<8x8x1xf32, #tpu.memory_space<vmem>>, %arg2: memref<1x128xf32, #tpu.memory_space<vmem>>, %arg3: memref<32x128xf32, #tpu.memory_space<vmem>>, %arg4: memref<1x128xf32, #tpu.memory_space<vmem>>, %arg5: memref<1x32xf32, #tpu.memory_space<vmem>>, %arg6: memref<1x1xf32, #tpu.memory_space<vmem>>, %arg7: memref<8x1xf32, #tpu.memory_space<vmem>>, %arg8: memref<8x8x128xf32, #tpu.memory_space<vmem>>) attributes {dimension_semantics = [#tpu.dimension_semantics<parallel>], iteration_bounds = array<i64: 1>, scalar_prefetch = 0 : i64, scratch_operands = 1 : i64, tpu.core_type = #tpu.core_type<tc>, window_params = [{transform_indices = @transform_0, window_bounds = array<i64: 8, 8, 1>}, {pipeline_mode = #tpu.pipeline_mode<synchronous>, transform_indices = @transform_1, window_bounds = array<i64: 1, 128>}, {pipeline_mode = #tpu.pipeline_mode<synchronous>, transform_indices = @transform_2, window_bounds = array<i64: 32, 128>}, {pipeline_mode = #tpu.pipeline_mode<synchronous>, transform_indices = @transform_3, window_bounds = array<i64: 1, 128>}, {pipeline_mode = #tpu.pipeline_mode<synchronous>, transform_indices = @transform_4, window_bounds = array<i64: 1, 32>}, {pipeline_mode = #tpu.pipeline_mode<synchronous>, transform_indices = @transform_5, window_bounds = array<i64: 1, 1>}, {transform_indices = @transform_6, window_bounds = array<i64: 8, 1>}]} {
    %c0 = arith.constant 0 : index
    %c0_0 = arith.constant 0 : index
    %c0_1 = arith.constant 0 : index
    %0 = vector.load %arg1[%c0, %c0_0, %c0_1] : memref<8x8x1xf32, #tpu.memory_space<vmem>>, vector<8x8x1xf32>
    %c0_2 = arith.constant 0 : index
    %c0_3 = arith.constant 0 : index
    %1 = vector.load %arg2[%c0_2, %c0_3] : memref<1x128xf32, #tpu.memory_space<vmem>>, vector<1x128xf32>
    %2 = vector.shape_cast %1 : vector<1x128xf32> to vector<1x1x128xf32>
    %3 = vector.broadcast %0 : vector<8x8x1xf32> to vector<8x8x128xf32>
    %4 = vector.broadcast %2 : vector<1x1x128xf32> to vector<8x8x128xf32>
    %5 = arith.mulf %3, %4 : vector<8x8x128xf32>
    %c0_4 = arith.constant 0 : index
    %c0_5 = arith.constant 0 : index
    %6 = vector.load %arg4[%c0_4, %c0_5] : memref<1x128xf32, #tpu.memory_space<vmem>>, vector<1x128xf32>
    %7 = vector.shape_cast %6 : vector<1x128xf32> to vector<1x1x128xf32>
    %8 = vector.broadcast %7 : vector<1x1x128xf32> to vector<8x8x128xf32>
    %9 = arith.addf %5, %8 : vector<8x8x128xf32>
    %c0_6 = arith.constant 0 : index
    %c0_7 = arith.constant 0 : index
    %c0_8 = arith.constant 0 : index
    %10 = vector.load %arg8[%c0_6, %c0_7, %c0_8] : memref<8x8x128xf32, #tpu.memory_space<vmem>>, vector<8x8x128xf32>
    tpu.vector_store %arg8[%c0_6, %c0_7, %c0_8], %9 {strides = array<i32>} : memref<8x8x128xf32, #tpu.memory_space<vmem>>, vector<8x8x128xf32>,
    %c0_9 = arith.constant 0 : index
    %c0_10 = arith.constant 0 : index
    %11 = vector.load %arg3[%c0_9, %c0_10] : memref<32x128xf32, #tpu.memory_space<vmem>>, vector<32x128xf32>
    %cst = arith.constant 0.000000e+00 : f32
    %12 = vector.broadcast %cst : f32 to vector<8x32xf32>
    %cst_11 = arith.constant 0.000000e+00 : f32
    %13 = vector.broadcast %cst_11 : f32 to vector<8x32xf32>
    %c0_i32 = arith.constant 0 : i32
    %14 = arith.index_cast %c0_i32 : i32 to index
    %c0_12 = arith.constant 0 : index
    %c0_13 = arith.constant 0 : index
    %15 = vector.load %arg8[%14, %c0_12, %c0_13] : memref<8x8x128xf32, #tpu.memory_space<vmem>>, vector<1x8x128xf32>
    %16 = vector.shape_cast %15 : vector<1x8x128xf32> to vector<8x128xf32>
    %cst_14 = arith.constant dense<0.000000e+00> : vector<8x128xf32>
    %17 = tpu.matmul %12, %11, %cst_14 {dimension_numbers = #tpu.dot_dimension_numbers<[1], [0], [0], [1], [0, 0, 1, 1], [], []>} : vector<8x32xf32>, vector<32x128xf32>, vector<8x128xf32> -> vector<8x128xf32>
    %18 = arith.addf %17, %16 : vector<8x128xf32>
    %19 = arith.negf %18 : vector<8x128xf32>
    %20 = math.exp %19 : vector<8x128xf32>
    %cst_15 = arith.constant 1.000000e+00 : f32
    %21 = vector.broadcast %cst_15 : f32 to vector<8x128xf32>
    %22 = arith.addf %21, %20 : vector<8x128xf32>
    %23 = arith.divf %21, %22 : vector<8x128xf32>
    %24 = math.tanh %18 : vector<8x128xf32>
    %25 = vector.extract_strided_slice %23 {offsets = [0, 0], sizes = [8, 32], strides = [1, 1]} : vector<8x128xf32> to vector<8x32xf32>
    %26 = vector.extract_strided_slice %23 {offsets = [0, 32], sizes = [8, 32], strides = [1, 1]} : vector<8x128xf32> to vector<8x32xf32>
    %27 = vector.extract_strided_slice %24 {offsets = [0, 64], sizes = [8, 32], strides = [1, 1]} : vector<8x128xf32> to vector<8x32xf32>
    %28 = vector.extract_strided_slice %23 {offsets = [0, 96], sizes = [8, 32], strides = [1, 1]} : vector<8x128xf32> to vector<8x32xf32>
    %29 = arith.mulf %26, %13 : vector<8x32xf32>
    %30 = arith.mulf %25, %27 : vector<8x32xf32>
    %31 = arith.addf %29, %30 : vector<8x32xf32>
    %32 = math.tanh %31 : vector<8x32xf32>
    %33 = arith.mulf %28, %32 : vector<8x32xf32>
    %c1_i32 = arith.constant 1 : i32
    %34 = arith.index_cast %c1_i32 : i32 to index
    %c0_16 = arith.constant 0 : index
    %c0_17 = arith.constant 0 : index
    %35 = vector.load %arg8[%34, %c0_16, %c0_17] : memref<8x8x128xf32, #tpu.memory_space<vmem>>, vector<1x8x128xf32>
    %36 = vector.shape_cast %35 : vector<1x8x128xf32> to vector<8x128xf32>
    %cst_18 = arith.constant dense<0.000000e+00> : vector<8x128xf32>
    %37 = tpu.matmul %33, %11, %cst_18 {dimension_numbers = #tpu.dot_dimension_numbers<[1], [0], [0], [1], [0, 0, 1, 1], [], []>} : vector<8x32xf32>, vector<32x128xf32>, vector<8x128xf32> -> vector<8x128xf32>
    %38 = arith.addf %37, %36 : vector<8x128xf32>
    %39 = arith.negf %38 : vector<8x128xf32>
    %40 = math.exp %39 : vector<8x128xf32>
    %cst_19 = arith.constant 1.000000e+00 : f32
    %41 = vector.broadcast %cst_19 : f32 to vector<8x128xf32>
    %42 = arith.addf %41, %40 : vector<8x128xf32>
    %43 = arith.divf %41, %42 : vector<8x128xf32>
    %44 = math.tanh %38 : vector<8x128xf32>
    %45 = vector.extract_strided_slice %43 {offsets = [0, 0], sizes = [8, 32], strides = [1, 1]} : vector<8x128xf32> to vector<8x32xf32>
    %46 = vector.extract_strided_slice %43 {offsets = [0, 32], sizes = [8, 32], strides = [1, 1]} : vector<8x128xf32> to vector<8x32xf32>
    %47 = vector.extract_strided_slice %44 {offsets = [0, 64], sizes = [8, 32], strides = [1, 1]} : vector<8x128xf32> to vector<8x32xf32>
    %48 = vector.extract_strided_slice %43 {offsets = [0, 96], sizes = [8, 32], strides = [1, 1]} : vector<8x128xf32> to vector<8x32xf32>
    %49 = arith.mulf %46, %31 : vector<8x32xf32>
    %50 = arith.mulf %45, %47 : vector<8x32xf32>
    %51 = arith.addf %49, %50 : vector<8x32xf32>
    %52 = math.tanh %51 : vector<8x32xf32>
    %53 = arith.mulf %48, %52 : vector<8x32xf32>
    %c2_i32 = arith.constant 2 : i32
    %54 = arith.index_cast %c2_i32 : i32 to index
    %c0_20 = arith.constant 0 : index
    %c0_21 = arith.constant 0 : index
    %55 = vector.load %arg8[%54, %c0_20, %c0_21] : memref<8x8x128xf32, #tpu.memory_space<vmem>>, vector<1x8x128xf32>
    %56 = vector.shape_cast %55 : vector<1x8x128xf32> to vector<8x128xf32>
    %cst_22 = arith.constant dense<0.000000e+00> : vector<8x128xf32>
    %57 = tpu.matmul %53, %11, %cst_22 {dimension_numbers = #tpu.dot_dimension_numbers<[1], [0], [0], [1], [0, 0, 1, 1], [], []>} : vector<8x32xf32>, vector<32x128xf32>, vector<8x128xf32> -> vector<8x128xf32>
    %58 = arith.addf %57, %56 : vector<8x128xf32>
    %59 = arith.negf %58 : vector<8x128xf32>
    %60 = math.exp %59 : vector<8x128xf32>
    %cst_23 = arith.constant 1.000000e+00 : f32
    %61 = vector.broadcast %cst_23 : f32 to vector<8x128xf32>
    %62 = arith.addf %61, %60 : vector<8x128xf32>
    %63 = arith.divf %61, %62 : vector<8x128xf32>
    %64 = math.tanh %58 : vector<8x128xf32>
    %65 = vector.extract_strided_slice %63 {offsets = [0, 0], sizes = [8, 32], strides = [1, 1]} : vector<8x128xf32> to vector<8x32xf32>
    %66 = vector.extract_strided_slice %63 {offsets = [0, 32], sizes = [8, 32], strides = [1, 1]} : vector<8x128xf32> to vector<8x32xf32>
    %67 = vector.extract_strided_slice %64 {offsets = [0, 64], sizes = [8, 32], strides = [1, 1]} : vector<8x128xf32> to vector<8x32xf32>
    %68 = vector.extract_strided_slice %63 {offsets = [0, 96], sizes = [8, 32], strides = [1, 1]} : vector<8x128xf32> to vector<8x32xf32>
    %69 = arith.mulf %66, %51 : vector<8x32xf32>
    %70 = arith.mulf %65, %67 : vector<8x32xf32>
    %71 = arith.addf %69, %70 : vector<8x32xf32>
    %72 = math.tanh %71 : vector<8x32xf32>
    %73 = arith.mulf %68, %72 : vector<8x32xf32>
    %c3_i32 = arith.constant 3 : i32
    %74 = arith.index_cast %c3_i32 : i32 to index
    %c0_24 = arith.constant 0 : index
    %c0_25 = arith.constant 0 : index
    %75 = vector.load %arg8[%74, %c0_24, %c0_25] : memref<8x8x128xf32, #tpu.memory_space<vmem>>, vector<1x8x128xf32>
    %76 = vector.shape_cast %75 : vector<1x8x128xf32> to vector<8x128xf32>
    %cst_26 = arith.constant dense<0.000000e+00> : vector<8x128xf32>
    %77 = tpu.matmul %73, %11, %cst_26 {dimension_numbers = #tpu.dot_dimension_numbers<[1], [0], [0], [1], [0, 0, 1, 1], [], []>} : vector<8x32xf32>, vector<32x128xf32>, vector<8x128xf32> -> vector<8x128xf32>
    %78 = arith.addf %77, %76 : vector<8x128xf32>
    %79 = arith.negf %78 : vector<8x128xf32>
    %80 = math.exp %79 : vector<8x128xf32>
    %cst_27 = arith.constant 1.000000e+00 : f32
    %81 = vector.broadcast %cst_27 : f32 to vector<8x128xf32>
    %82 = arith.addf %81, %80 : vector<8x128xf32>
    %83 = arith.divf %81, %82 : vector<8x128xf32>
    %84 = math.tanh %78 : vector<8x128xf32>
    %85 = vector.extract_strided_slice %83 {offsets = [0, 0], sizes = [8, 32], strides = [1, 1]} : vector<8x128xf32> to vector<8x32xf32>
    %86 = vector.extract_strided_slice %83 {offsets = [0, 32], sizes = [8, 32], strides = [1, 1]} : vector<8x128xf32> to vector<8x32xf32>
    %87 = vector.extract_strided_slice %84 {offsets = [0, 64], sizes = [8, 32], strides = [1, 1]} : vector<8x128xf32> to vector<8x32xf32>
    %88 = vector.extract_strided_slice %83 {offsets = [0, 96], sizes = [8, 32], strides = [1, 1]} : vector<8x128xf32> to vector<8x32xf32>
    %89 = arith.mulf %86, %71 : vector<8x32xf32>
    %90 = arith.mulf %85, %87 : vector<8x32xf32>
    %91 = arith.addf %89, %90 : vector<8x32xf32>
    %92 = math.tanh %91 : vector<8x32xf32>
    %93 = arith.mulf %88, %92 : vector<8x32xf32>
    %c4_i32 = arith.constant 4 : i32
    %94 = arith.index_cast %c4_i32 : i32 to index
    %c0_28 = arith.constant 0 : index
    %c0_29 = arith.constant 0 : index
    %95 = vector.load %arg8[%94, %c0_28, %c0_29] : memref<8x8x128xf32, #tpu.memory_space<vmem>>, vector<1x8x128xf32>
    %96 = vector.shape_cast %95 : vector<1x8x128xf32> to vector<8x128xf32>
    %cst_30 = arith.constant dense<0.000000e+00> : vector<8x128xf32>
    %97 = tpu.matmul %93, %11, %cst_30 {dimension_numbers = #tpu.dot_dimension_numbers<[1], [0], [0], [1], [0, 0, 1, 1], [], []>} : vector<8x32xf32>, vector<32x128xf32>, vector<8x128xf32> -> vector<8x128xf32>
    %98 = arith.addf %97, %96 : vector<8x128xf32>
    %99 = arith.negf %98 : vector<8x128xf32>
    %100 = math.exp %99 : vector<8x128xf32>
    %cst_31 = arith.constant 1.000000e+00 : f32
    %101 = vector.broadcast %cst_31 : f32 to vector<8x128xf32>
    %102 = arith.addf %101, %100 : vector<8x128xf32>
    %103 = arith.divf %101, %102 : vector<8x128xf32>
    %104 = math.tanh %98 : vector<8x128xf32>
    %105 = vector.extract_strided_slice %103 {offsets = [0, 0], sizes = [8, 32], strides = [1, 1]} : vector<8x128xf32> to vector<8x32xf32>
    %106 = vector.extract_strided_slice %103 {offsets = [0, 32], sizes = [8, 32], strides = [1, 1]} : vector<8x128xf32> to vector<8x32xf32>
    %107 = vector.extract_strided_slice %104 {offsets = [0, 64], sizes = [8, 32], strides = [1, 1]} : vector<8x128xf32> to vector<8x32xf32>
    %108 = vector.extract_strided_slice %103 {offsets = [0, 96], sizes = [8, 32], strides = [1, 1]} : vector<8x128xf32> to vector<8x32xf32>
    %109 = arith.mulf %106, %91 : vector<8x32xf32>
    %110 = arith.mulf %105, %107 : vector<8x32xf32>
    %111 = arith.addf %109, %110 : vector<8x32xf32>
    %112 = math.tanh %111 : vector<8x32xf32>
    %113 = arith.mulf %108, %112 : vector<8x32xf32>
    %c5_i32 = arith.constant 5 : i32
    %114 = arith.index_cast %c5_i32 : i32 to index
    %c0_32 = arith.constant 0 : index
    %c0_33 = arith.constant 0 : index
    %115 = vector.load %arg8[%114, %c0_32, %c0_33] : memref<8x8x128xf32, #tpu.memory_space<vmem>>, vector<1x8x128xf32>
    %116 = vector.shape_cast %115 : vector<1x8x128xf32> to vector<8x128xf32>
    %cst_34 = arith.constant dense<0.000000e+00> : vector<8x128xf32>
    %117 = tpu.matmul %113, %11, %cst_34 {dimension_numbers = #tpu.dot_dimension_numbers<[1], [0], [0], [1], [0, 0, 1, 1], [], []>} : vector<8x32xf32>, vector<32x128xf32>, vector<8x128xf32> -> vector<8x128xf32>
    %118 = arith.addf %117, %116 : vector<8x128xf32>
    %119 = arith.negf %118 : vector<8x128xf32>
    %120 = math.exp %119 : vector<8x128xf32>
    %cst_35 = arith.constant 1.000000e+00 : f32
    %121 = vector.broadcast %cst_35 : f32 to vector<8x128xf32>
    %122 = arith.addf %121, %120 : vector<8x128xf32>
    %123 = arith.divf %121, %122 : vector<8x128xf32>
    %124 = math.tanh %118 : vector<8x128xf32>
    %125 = vector.extract_strided_slice %123 {offsets = [0, 0], sizes = [8, 32], strides = [1, 1]} : vector<8x128xf32> to vector<8x32xf32>
    %126 = vector.extract_strided_slice %123 {offsets = [0, 32], sizes = [8, 32], strides = [1, 1]} : vector<8x128xf32> to vector<8x32xf32>
    %127 = vector.extract_strided_slice %124 {offsets = [0, 64], sizes = [8, 32], strides = [1, 1]} : vector<8x128xf32> to vector<8x32xf32>
    %128 = vector.extract_strided_slice %123 {offsets = [0, 96], sizes = [8, 32], strides = [1, 1]} : vector<8x128xf32> to vector<8x32xf32>
    %129 = arith.mulf %126, %111 : vector<8x32xf32>
    %130 = arith.mulf %125, %127 : vector<8x32xf32>
    %131 = arith.addf %129, %130 : vector<8x32xf32>
    %132 = math.tanh %131 : vector<8x32xf32>
    %133 = arith.mulf %128, %132 : vector<8x32xf32>
    %c6_i32 = arith.constant 6 : i32
    %134 = arith.index_cast %c6_i32 : i32 to index
    %c0_36 = arith.constant 0 : index
    %c0_37 = arith.constant 0 : index
    %135 = vector.load %arg8[%134, %c0_36, %c0_37] : memref<8x8x128xf32, #tpu.memory_space<vmem>>, vector<1x8x128xf32>
    %136 = vector.shape_cast %135 : vector<1x8x128xf32> to vector<8x128xf32>
    %cst_38 = arith.constant dense<0.000000e+00> : vector<8x128xf32>
    %137 = tpu.matmul %133, %11, %cst_38 {dimension_numbers = #tpu.dot_dimension_numbers<[1], [0], [0], [1], [0, 0, 1, 1], [], []>} : vector<8x32xf32>, vector<32x128xf32>, vector<8x128xf32> -> vector<8x128xf32>
    %138 = arith.addf %137, %136 : vector<8x128xf32>
    %139 = arith.negf %138 : vector<8x128xf32>
    %140 = math.exp %139 : vector<8x128xf32>
    %cst_39 = arith.constant 1.000000e+00 : f32
    %141 = vector.broadcast %cst_39 : f32 to vector<8x128xf32>
    %142 = arith.addf %141, %140 : vector<8x128xf32>
    %143 = arith.divf %141, %142 : vector<8x128xf32>
    %144 = math.tanh %138 : vector<8x128xf32>
    %145 = vector.extract_strided_slice %143 {offsets = [0, 0], sizes = [8, 32], strides = [1, 1]} : vector<8x128xf32> to vector<8x32xf32>
    %146 = vector.extract_strided_slice %143 {offsets = [0, 32], sizes = [8, 32], strides = [1, 1]} : vector<8x128xf32> to vector<8x32xf32>
    %147 = vector.extract_strided_slice %144 {offsets = [0, 64], sizes = [8, 32], strides = [1, 1]} : vector<8x128xf32> to vector<8x32xf32>
    %148 = vector.extract_strided_slice %143 {offsets = [0, 96], sizes = [8, 32], strides = [1, 1]} : vector<8x128xf32> to vector<8x32xf32>
    %149 = arith.mulf %146, %131 : vector<8x32xf32>
    %150 = arith.mulf %145, %147 : vector<8x32xf32>
    %151 = arith.addf %149, %150 : vector<8x32xf32>
    %152 = math.tanh %151 : vector<8x32xf32>
    %153 = arith.mulf %148, %152 : vector<8x32xf32>
    %c7_i32 = arith.constant 7 : i32
    %154 = arith.index_cast %c7_i32 : i32 to index
    %c0_40 = arith.constant 0 : index
    %c0_41 = arith.constant 0 : index
    %155 = vector.load %arg8[%154, %c0_40, %c0_41] : memref<8x8x128xf32, #tpu.memory_space<vmem>>, vector<1x8x128xf32>
    %156 = vector.shape_cast %155 : vector<1x8x128xf32> to vector<8x128xf32>
    %cst_42 = arith.constant dense<0.000000e+00> : vector<8x128xf32>
    %157 = tpu.matmul %153, %11, %cst_42 {dimension_numbers = #tpu.dot_dimension_numbers<[1], [0], [0], [1], [0, 0, 1, 1], [], []>} : vector<8x32xf32>, vector<32x128xf32>, vector<8x128xf32> -> vector<8x128xf32>
    %158 = arith.addf %157, %156 : vector<8x128xf32>
    %159 = arith.negf %158 : vector<8x128xf32>
    %160 = math.exp %159 : vector<8x128xf32>
    %cst_43 = arith.constant 1.000000e+00 : f32
    %161 = vector.broadcast %cst_43 : f32 to vector<8x128xf32>
    %162 = arith.addf %161, %160 : vector<8x128xf32>
    %163 = arith.divf %161, %162 : vector<8x128xf32>
    %164 = math.tanh %158 : vector<8x128xf32>
    %165 = vector.extract_strided_slice %163 {offsets = [0, 0], sizes = [8, 32], strides = [1, 1]} : vector<8x128xf32> to vector<8x32xf32>
    %166 = vector.extract_strided_slice %163 {offsets = [0, 32], sizes = [8, 32], strides = [1, 1]} : vector<8x128xf32> to vector<8x32xf32>
    %167 = vector.extract_strided_slice %164 {offsets = [0, 64], sizes = [8, 32], strides = [1, 1]} : vector<8x128xf32> to vector<8x32xf32>
    %168 = vector.extract_strided_slice %163 {offsets = [0, 96], sizes = [8, 32], strides = [1, 1]} : vector<8x128xf32> to vector<8x32xf32>
    %169 = arith.mulf %166, %151 : vector<8x32xf32>
    %170 = arith.mulf %165, %167 : vector<8x32xf32>
    %171 = arith.addf %169, %170 : vector<8x32xf32>
    %172 = math.tanh %171 : vector<8x32xf32>
    %173 = arith.mulf %168, %172 : vector<8x32xf32>
    %c8_i32 = arith.constant 8 : i32
    %c0_44 = arith.constant 0 : index
    %c0_45 = arith.constant 0 : index
    %174 = vector.load %arg5[%c0_44, %c0_45] : memref<1x32xf32, #tpu.memory_space<vmem>>, vector<1x32xf32>
    %175 = vector.broadcast %174 : vector<1x32xf32> to vector<8x32xf32>
    %176 = arith.mulf %173, %175 : vector<8x32xf32>
    %cst_46 = arith.constant dense<0.000000e+00> : vector<8xf32>
    %177 = vector.multi_reduction <add>, %176, %cst_46 [1] : vector<8x32xf32> to vector<8xf32>
    %178 = vector.shape_cast %177 : vector<8xf32> to vector<8x1xf32>
    %c0_47 = arith.constant 0 : index
    %c0_48 = arith.constant 0 : index
    %179 = vector.load %arg6[%c0_47, %c0_48] : memref<1x1xf32, #tpu.memory_space<vmem>>, vector<1x1xf32>
    %180 = vector.broadcast %179 : vector<1x1xf32> to vector<8x1xf32>
    %181 = arith.addf %178, %180 : vector<8x1xf32>
    %c0_49 = arith.constant 0 : index
    %c0_50 = arith.constant 0 : index
    %182 = vector.load %arg7[%c0_49, %c0_50] : memref<8x1xf32, #tpu.memory_space<vmem>>, vector<8x1xf32>
    tpu.vector_store %arg7[%c0_49, %c0_50], %181 {strides = array<i32>} : memref<8x1xf32, #tpu.memory_space<vmem>>, vector<8x1xf32>,
    return
  }
  func.func @transform_0(%arg0: i32) -> (i32, i32, i32) {
    %c0_i32 = arith.constant 0 : i32
    %c0_i32_0 = arith.constant 0 : i32
    %c0_i32_1 = arith.constant 0 : i32
    return %c0_i32, %arg0, %c0_i32_0 : i32, i32, i32
  }
  func.func @transform_1(%arg0: i32) -> (i32, i32) {
    %c0_i32 = arith.constant 0 : i32
    %c0_i32_0 = arith.constant 0 : i32
    %c0_i32_1 = arith.constant 0 : i32
    return %c0_i32, %c0_i32_0 : i32, i32
  }
  func.func @transform_2(%arg0: i32) -> (i32, i32) {
    %c0_i32 = arith.constant 0 : i32
    %c0_i32_0 = arith.constant 0 : i32
    %c0_i32_1 = arith.constant 0 : i32
    return %c0_i32, %c0_i32_0 : i32, i32
  }
  func.func @transform_3(%arg0: i32) -> (i32, i32) {
    %c0_i32 = arith.constant 0 : i32
    %c0_i32_0 = arith.constant 0 : i32
    %c0_i32_1 = arith.constant 0 : i32
    return %c0_i32, %c0_i32_0 : i32, i32
  }
  func.func @transform_4(%arg0: i32) -> (i32, i32) {
    %c0_i32 = arith.constant 0 : i32
    %c0_i32_0 = arith.constant 0 : i32
    %c0_i32_1 = arith.constant 0 : i32
    return %c0_i32, %c0_i32_0 : i32, i32
  }
  func.func @transform_5(%arg0: i32) -> (i32, i32) {
    %c0_i32 = arith.constant 0 : i32
    %c0_i32_0 = arith.constant 0 : i32
    %c0_i32_1 = arith.constant 0 : i32
    return %c0_i32, %c0_i32_0 : i32, i32
  }
  func.func @transform_6(%arg0: i32) -> (i32, i32) {
    %c0_i32 = arith.constant 0 : i32
    %c0_i32_0 = arith.constant 0 : i32
    return %arg0, %c0_i32 : i32, i32
  }
}

</mosaic_0001>

<llo_original>
// kernel: tpu_custom_call.1
$region0: #{tpu_custom_call.1}
  #allocation0 [shape = 'u32[]', space=smem, size = 0x4, offset = 0x4, fixed_abs, tag = 'smem constant byte address 0x4 - core index']
  #allocation1 [shape = 'u32[72,128]{1,0:T(1,128)}', space=vmem, size = 0x9000, scoped, tag = 'internal scratch']
  #allocation2 [shape = 'f32[8,8,128]{2,1,0:T(8,128)}', space=vmem, size = 0x8000, scoped, tag = 'scratch operand']
  #allocation3 [shape = 'f32[1,1]{1,0:T(1,128)S(1)}', space=vmem, size = 0x200, scoped, tag = 'scoped memory for tpu_custom_call.1']
  %s0 = inlined_call_operand.vmem [shape: f32[8,8,1], index: 0, kind: input, shape index: {}]
  %s1 = inlined_call_operand.vmem [shape: f32[1,128], index: 1, kind: input, shape index: {}]
  %s2 = inlined_call_operand.vmem [shape: f32[32,128], index: 2, kind: input, shape index: {}]
  %s3 = inlined_call_operand.vmem [shape: f32[1,128], index: 3, kind: input, shape index: {}]
  %s4 = inlined_call_operand.vmem [shape: f32[1,32], index: 4, kind: input, shape index: {}]
  %s5 = inlined_call_operand.<no memory space> [shape: f32[1,1], index: 5, kind: input, shape index: {}]
  %s6 = inlined_call_operand.vmem [shape: f32[8,1], index: 6, kind: output, shape index: {}]
  %s7 = sld [smem:[#allocation0]]
  $region34: #{tpu_custom_call.1} parent=0
    _
  %s9 = ssub.s32 1, %s7
  %s10 = scalar_select 0, %s9, %s7
  %v11 = vstv %s5
  %12 = vst [vmem:[#allocation3] sm:$0x1] %v11
  // Predicated region
  $region2: #{tpu_custom_call.1} parent=0 // pred_check
    _
  $region3: #{tpu_custom_call.1} parent=0 // pred_check_branch
    %14 = sbr.rel (0) target = $region5
  $region4: #{tpu_custom_call.1} parent=0 // pred_region
    _
  $region5: #{tpu_custom_call.1} parent=0 // pred_fallthru
    _
  // Predicated region
  $region6: #{tpu_custom_call.1} parent=0 // pred_check
    _
  $region7: #{tpu_custom_call.1} parent=0 // pred_check_branch
    %16 = sbr.rel (0) target = $region9
  $region8: #{tpu_custom_call.1} parent=0 // pred_region
    _
  $region9: #{tpu_custom_call.1} parent=0 // pred_fallthru
    _
  // Predicated region
  $region10: #{tpu_custom_call.1} parent=0 // pred_check
    _
  $region11: #{tpu_custom_call.1} parent=0 // pred_check_branch
    %18 = sbr.rel (0) target = $region13
  $region12: #{tpu_custom_call.1} parent=0 // pred_region
    _
  $region13: #{tpu_custom_call.1} parent=0 // pred_fallthru
    _
  // Predicated region
  $region14: #{tpu_custom_call.1} parent=0 // pred_check
    _
  $region15: #{tpu_custom_call.1} parent=0 // pred_check_branch
    %20 = sbr.rel (0) target = $region17
  $region16: #{tpu_custom_call.1} parent=0 // pred_region
    _
  $region17: #{tpu_custom_call.1} parent=0 // pred_fallthru
    _
  // Predicated region
  $region18: #{tpu_custom_call.1} parent=0 // pred_check
    _
  $region19: #{tpu_custom_call.1} parent=0 // pred_check_branch
    %22 = sbr.rel (0) target = $region21
  $region20: #{tpu_custom_call.1} parent=0 // pred_region
    _
  $region21: #{tpu_custom_call.1} parent=0 // pred_fallthru
    _
  // Predicated region
  $region22: #{tpu_custom_call.1} parent=0 // pred_check
    _
  $region23: #{tpu_custom_call.1} parent=0 // pred_check_branch
    %24 = sbr.rel (0) target = $region25
  $region24: #{tpu_custom_call.1} parent=0 // pred_region
    _
  $region25: #{tpu_custom_call.1} parent=0 // pred_fallthru
    _
  %v25 = vld [vmem:[%s0] sm:$0xff]
  %v26 = vld [vmem:[%s0 + $0x8] sm:$0xff]
  %v27 = vld [vmem:[%s0 + $0x10] sm:$0xff]
  %v28 = vld [vmem:[%s0 + $0x18] sm:$0xff]
  %v29 = vld [vmem:[%s0 + $0x20] sm:$0xff]
  %v30 = vld [vmem:[%s0 + $0x28] sm:$0xff]
  %v31 = vld [vmem:[%s0 + $0x30] sm:$0xff]
  %v32 = vld [vmem:[%s0 + $0x38] sm:$0xff]
  %v33 = vld [vmem:[%s1] sm:$0x1]
  %35 = vset.pattern.permute.xlu0 0
  %36 = vperm.xlu0 %35, %v25
  %v37 = vpop.permute.xlu0 %36
  %40 = vset.pattern.permute.xlu0 0
  %41 = vperm.xlu0 %40, %v26
  %v42 = vpop.permute.xlu0 %41
  %45 = vset.pattern.permute.xlu0 0
  %46 = vperm.xlu0 %45, %v27
  %v47 = vpop.permute.xlu0 %46
  %50 = vset.pattern.permute.xlu0 0
  %51 = vperm.xlu0 %50, %v28
  %v52 = vpop.permute.xlu0 %51
  %55 = vset.pattern.permute.xlu0 0
  %56 = vperm.xlu0 %55, %v29
  %v57 = vpop.permute.xlu0 %56
  %60 = vset.pattern.permute.xlu0 0
  %61 = vperm.xlu0 %60, %v30
  %v62 = vpop.permute.xlu0 %61
  %65 = vset.pattern.permute.xlu0 0
  %66 = vperm.xlu0 %65, %v31
  %v67 = vpop.permute.xlu0 %66
  %70 = vset.pattern.permute.xlu0 0
  %71 = vperm.xlu0 %70, %v32
  %v72 = vpop.permute.xlu0 %71
  %v75 = vperm.slane %v33, 0
  %v77 = vmul.f32 %v37, %v75
  %v78 = vmul.f32 %v42, %v75
  %v79 = vmul.f32 %v47, %v75
  %v80 = vmul.f32 %v52, %v75
  %v81 = vmul.f32 %v57, %v75
  %v82 = vmul.f32 %v62, %v75
  %v83 = vmul.f32 %v67, %v75
  %v84 = vmul.f32 %v72, %v75
  %v85 = vld [vmem:[%s3] sm:$0x1]
  %v87 = vperm.slane %v85, 0
  %v89 = vadd.f32 %v77, %v87
  %v90 = vadd.f32 %v78, %v87
  %v91 = vadd.f32 %v79, %v87
  %v92 = vadd.f32 %v80, %v87
  %v93 = vadd.f32 %v81, %v87
  %v94 = vadd.f32 %v82, %v87
  %v95 = vadd.f32 %v83, %v87
  %v96 = vadd.f32 %v84, %v87
  %97 = vst [vmem:[#allocation2] sm:$0xff] %v89
  %98 = vst [vmem:[#allocation2 + $0x8] sm:$0xff] %v90
  %99 = vst [vmem:[#allocation2 + $0x10] sm:$0xff] %v91
  %100 = vst [vmem:[#allocation2 + $0x18] sm:$0xff] %v92
  %101 = vst [vmem:[#allocation2 + $0x20] sm:$0xff] %v93
  %102 = vst [vmem:[#allocation2 + $0x28] sm:$0xff] %v94
  %103 = vst [vmem:[#allocation2 + $0x30] sm:$0xff] %v95
  %104 = vst [vmem:[#allocation2 + $0x38] sm:$0xff] %v96
  %v105 = vld [vmem:[%s2] sm:$0xff]
  %v106 = vld [vmem:[%s2 + $0x8] sm:$0xff]
  %v107 = vld [vmem:[%s2 + $0x10] sm:$0xff]
  %v108 = vld [vmem:[%s2 + $0x18] sm:$0xff]
  %v109 = vld [vmem:[#allocation2] sm:$0xff]
  %vm110 = vcmask 261120
  %v112 = vsel %vm110, 0.0, 0
  %114 = vmatpush.msra.mxu0 0.0
  %115 = vmatpush.msra.mxu0 0.0
  %116 = vmatpush.msra.mxu0 0.0
  %117 = vmatpush.msra.mxu0 0.0
  %118 = vmatpush.msra.mxu0 0.0
  %119 = vmatpush.msra.mxu0 0.0
  %120 = vmatpush.msra.mxu0 0.0
  %121 = vmatpush.msra.mxu0 0.0
  %122 = vmatpush.msra.mxu0 0.0
  %123 = vmatpush.msra.mxu0 0.0
  %124 = vmatpush.msra.mxu0 0.0
  %125 = vmatpush.msra.mxu0 0.0
  %126 = vmatpush.msra.mxu0 %v108
  %127 = vmatpush.msra.mxu0 %v107
  %128 = vmatpush.msra.mxu0 %v106
  %129 = vmatpush.msra.mxu0 %v105
  %130 = vmatmul.f32.gmra.mxu0 %v112
  %v131 = vpop.f32.mrf.mxu0
  %v132 = vadd.f32 %v109, %v131
  %133 = vdwg.mxu0
  %v134 = vxor.u32 %v132, 2147483648
  %v135 = vmul.f32 %v134, 1.442695
  %v136 = vpow.pop %v135
  %v137 = vadd.f32 %v136, 1.0
  %v138 = vrcp.pop %v137
  %v139 = vmul.f32 %v137, %v138
  %v140 = vsub.f32 1.0, %v139
  %v141 = vmul.f32 %v138, %v140
  %v142 = vadd.f32 %v138, %v141
  %vm143 = vweird.f32 %v137
  %vm144 = vweird.f32 %v138
  %vm145 = vmor %vm143, %vm144
  %v146 = vsel %vm145, %v138, %v142
  %v147 = vand.u32 2147483647, %v137
  %vm148 = vcmp.eq.f32.partialorder %v147, 8.507059e+37
  %v149 = vand.u32 %v137, 2147483648
  %v150 = vor.u32 1.1754944e-38, %v149
  %v151 = vsel %vm148, %v150, %v146
  %v152 = vmul.f32 1.0, %v151
  %v153 = vtanh.pop %v132
  %v154 = vmul.f32 %v152, 0.0
  %156 = vrot.lane.b32.xlu0 %v153, 64
  %v157 = vpop.permute.xlu0 %156
  %v159 = vmul.f32 %v152, %v157
  %161 = vrot.lane.b32.xlu0 %v159, 32
  %v162 = vpop.permute.xlu0 %161
  %v164 = vadd.f32 %v154, %v162
  %v165 = vtanh.pop %v164
  %167 = vrot.lane.b32.xlu0 %v165, 64
  %v168 = vpop.permute.xlu0 %167
  %v170 = vmul.f32 %v152, %v168
  %s171 = scalar_lea.vmem [#allocation2], 8
  %v172 = vld [vmem:[%s171] sm:$0xff]
  %174 = vrot.lane.b32.xlu0 %v170, 32
  %v175 = vpop.permute.xlu0 %174
  %v176 = vsel %vm110, %v175, 0
  %178 = vmatpush.msra.mxu0 0.0
  %179 = vmatpush.msra.mxu0 0.0
  %180 = vmatpush.msra.mxu0 0.0
  %181 = vmatpush.msra.mxu0 0.0
  %182 = vmatpush.msra.mxu0 0.0
  %183 = vmatpush.msra.mxu0 0.0
  %184 = vmatpush.msra.mxu0 0.0
  %185 = vmatpush.msra.mxu0 0.0
  %186 = vmatpush.msra.mxu0 0.0
  %187 = vmatpush.msra.mxu0 0.0
  %188 = vmatpush.msra.mxu0 0.0
  %189 = vmatpush.msra.mxu0 0.0
  %190 = vmatpush.msra.mxu0 %v108
  %191 = vmatpush.msra.mxu0 %v107
  %192 = vmatpush.msra.mxu0 %v106
  %193 = vmatpush.msra.mxu0 %v105
  %194 = vmatmul.f32.gmra.mxu0 %v176
  %v195 = vpop.f32.mrf.mxu0
  %v196 = vadd.f32 %v172, %v195
  %197 = vdwg.mxu0
  %v198 = vxor.u32 %v196, 2147483648
  %v199 = vmul.f32 %v198, 1.442695
  %v200 = vpow.pop %v199
  %v201 = vadd.f32 %v200, 1.0
  %v202 = vrcp.pop %v201
  %v203 = vmul.f32 %v201, %v202
  %v204 = vsub.f32 1.0, %v203
  %v205 = vmul.f32 %v202, %v204
  %v206 = vadd.f32 %v202, %v205
  %vm207 = vweird.f32 %v201
  %vm208 = vweird.f32 %v202
  %vm209 = vmor %vm207, %vm208
  %v210 = vsel %vm209, %v202, %v206
  %v211 = vand.u32 2147483647, %v201
  %vm212 = vcmp.eq.f32.partialorder %v211, 8.507059e+37
  %v213 = vand.u32 %v201, 2147483648
  %v214 = vor.u32 1.1754944e-38, %v213
  %v215 = vsel %vm212, %v214, %v210
  %v216 = vmul.f32 1.0, %v215
  %v217 = vtanh.pop %v196
  %v218 = vmul.f32 %v216, %v164
  %220 = vrot.lane.b32.xlu0 %v217, 64
  %v221 = vpop.permute.xlu0 %220
  %v223 = vmul.f32 %v216, %v221
  %225 = vrot.lane.b32.xlu0 %v223, 32
  %v226 = vpop.permute.xlu0 %225
  %v228 = vadd.f32 %v218, %v226
  %v229 = vtanh.pop %v228
  %231 = vrot.lane.b32.xlu0 %v229, 64
  %v232 = vpop.permute.xlu0 %231
  %v234 = vmul.f32 %v216, %v232
  %s235 = scalar_lea.vmem [#allocation2], 16
  %v236 = vld [vmem:[%s235] sm:$0xff]
  %238 = vrot.lane.b32.xlu0 %v234, 32
  %v239 = vpop.permute.xlu0 %238
  %v240 = vsel %vm110, %v239, 0
  %242 = vmatpush.msra.mxu0 0.0
  %243 = vmatpush.msra.mxu0 0.0
  %244 = vmatpush.msra.mxu0 0.0
  %245 = vmatpush.msra.mxu0 0.0
  %246 = vmatpush.msra.mxu0 0.0
  %247 = vmatpush.msra.mxu0 0.0
  %248 = vmatpush.msra.mxu0 0.0
  %249 = vmatpush.msra.mxu0 0.0
  %250 = vmatpush.msra.mxu0 0.0
  %251 = vmatpush.msra.mxu0 0.0
  %252 = vmatpush.msra.mxu0 0.0
  %253 = vmatpush.msra.mxu0 0.0
  %254 = vmatpush.msra.mxu0 %v108
  %255 = vmatpush.msra.mxu0 %v107
  %256 = vmatpush.msra.mxu0 %v106
  %257 = vmatpush.msra.mxu0 %v105
  %258 = vmatmul.f32.gmra.mxu0 %v240
  %v259 = vpop.f32.mrf.mxu0
  %v260 = vadd.f32 %v236, %v259
  %261 = vdwg.mxu0
  %v262 = vxor.u32 %v260, 2147483648
  %v263 = vmul.f32 %v262, 1.442695
  %v264 = vpow.pop %v263
  %v265 = vadd.f32 %v264, 1.0
  %v266 = vrcp.pop %v265
  %v267 = vmul.f32 %v265, %v266
  %v268 = vsub.f32 1.0, %v267
  %v269 = vmul.f32 %v266, %v268
  %v270 = vadd.f32 %v266, %v269
  %vm271 = vweird.f32 %v265
  %vm272 = vweird.f32 %v266
  %vm273 = vmor %vm271, %vm272
  %v274 = vsel %vm273, %v266, %v270
  %v275 = vand.u32 2147483647, %v265
  %vm276 = vcmp.eq.f32.partialorder %v275, 8.507059e+37
  %v277 = vand.u32 %v265, 2147483648
  %v278 = vor.u32 1.1754944e-38, %v277
  %v279 = vsel %vm276, %v278, %v274
  %v280 = vmul.f32 1.0, %v279
  %v281 = vtanh.pop %v260
  %v282 = vmul.f32 %v280, %v228
  %284 = vrot.lane.b32.xlu0 %v281, 64
  %v285 = vpop.permute.xlu0 %284
  %v287 = vmul.f32 %v280, %v285
  %289 = vrot.lane.b32.xlu0 %v287, 32
  %v290 = vpop.permute.xlu0 %289
  %v292 = vadd.f32 %v282, %v290
  %v293 = vtanh.pop %v292
  %295 = vrot.lane.b32.xlu0 %v293, 64
  %v296 = vpop.permute.xlu0 %295
  %v298 = vmul.f32 %v280, %v296
  %s299 = scalar_lea.vmem [#allocation2], 24
  %v300 = vld [vmem:[%s299] sm:$0xff]
  %302 = vrot.lane.b32.xlu0 %v298, 32
  %v303 = vpop.permute.xlu0 %302
  %v304 = vsel %vm110, %v303, 0
  %306 = vmatpush.msra.mxu0 0.0
  %307 = vmatpush.msra.mxu0 0.0
  %308 = vmatpush.msra.mxu0 0.0
  %309 = vmatpush.msra.mxu0 0.0
  %310 = vmatpush.msra.mxu0 0.0
  %311 = vmatpush.msra.mxu0 0.0
  %312 = vmatpush.msra.mxu0 0.0
  %313 = vmatpush.msra.mxu0 0.0
  %314 = vmatpush.msra.mxu0 0.0
  %315 = vmatpush.msra.mxu0 0.0
  %316 = vmatpush.msra.mxu0 0.0
  %317 = vmatpush.msra.mxu0 0.0
  %318 = vmatpush.msra.mxu0 %v108
  %319 = vmatpush.msra.mxu0 %v107
  %320 = vmatpush.msra.mxu0 %v106
  %321 = vmatpush.msra.mxu0 %v105
  %322 = vmatmul.f32.gmra.mxu0 %v304
  %v323 = vpop.f32.mrf.mxu0
  %v324 = vadd.f32 %v300, %v323
  %325 = vdwg.mxu0
  %v326 = vxor.u32 %v324, 2147483648
  %v327 = vmul.f32 %v326, 1.442695
  %v328 = vpow.pop %v327
  %v329 = vadd.f32 %v328, 1.0
  %v330 = vrcp.pop %v329
  %v331 = vmul.f32 %v329, %v330
  %v332 = vsub.f32 1.0, %v331
  %v333 = vmul.f32 %v330, %v332
  %v334 = vadd.f32 %v330, %v333
  %vm335 = vweird.f32 %v329
  %vm336 = vweird.f32 %v330
  %vm337 = vmor %vm335, %vm336
  %v338 = vsel %vm337, %v330, %v334
  %v339 = vand.u32 2147483647, %v329
  %vm340 = vcmp.eq.f32.partialorder %v339, 8.507059e+37
  %v341 = vand.u32 %v329, 2147483648
  %v342 = vor.u32 1.1754944e-38, %v341
  %v343 = vsel %vm340, %v342, %v338
  %v344 = vmul.f32 1.0, %v343
  %v345 = vtanh.pop %v324
  %v346 = vmul.f32 %v344, %v292
  %348 = vrot.lane.b32.xlu0 %v345, 64
  %v349 = vpop.permute.xlu0 %348
  %v351 = vmul.f32 %v344, %v349
  %353 = vrot.lane.b32.xlu0 %v351, 32
  %v354 = vpop.permute.xlu0 %353
  %v356 = vadd.f32 %v346, %v354
  %v357 = vtanh.pop %v356
  %359 = vrot.lane.b32.xlu0 %v357, 64
  %v360 = vpop.permute.xlu0 %359
  %v362 = vmul.f32 %v344, %v360
  %s363 = scalar_lea.vmem [#allocation2], 32
  %v364 = vld [vmem:[%s363] sm:$0xff]
  %366 = vrot.lane.b32.xlu0 %v362, 32
  %v367 = vpop.permute.xlu0 %366
  %v368 = vsel %vm110, %v367, 0
  %370 = vmatpush.msra.mxu0 0.0
  %371 = vmatpush.msra.mxu0 0.0
  %372 = vmatpush.msra.mxu0 0.0
  %373 = vmatpush.msra.mxu0 0.0
  %374 = vmatpush.msra.mxu0 0.0
  %375 = vmatpush.msra.mxu0 0.0
  %376 = vmatpush.msra.mxu0 0.0
  %377 = vmatpush.msra.mxu0 0.0
  %378 = vmatpush.msra.mxu0 0.0
  %379 = vmatpush.msra.mxu0 0.0
  %380 = vmatpush.msra.mxu0 0.0
  %381 = vmatpush.msra.mxu0 0.0
  %382 = vmatpush.msra.mxu0 %v108
  %383 = vmatpush.msra.mxu0 %v107
  %384 = vmatpush.msra.mxu0 %v106
  %385 = vmatpush.msra.mxu0 %v105
  %386 = vmatmul.f32.gmra.mxu0 %v368
  %v387 = vpop.f32.mrf.mxu0
  %v388 = vadd.f32 %v364, %v387
  %389 = vdwg.mxu0
  %v390 = vxor.u32 %v388, 2147483648
  %v391 = vmul.f32 %v390, 1.442695
  %v392 = vpow.pop %v391
  %v393 = vadd.f32 %v392, 1.0
  %v394 = vrcp.pop %v393
  %v395 = vmul.f32 %v393, %v394
  %v396 = vsub.f32 1.0, %v395
  %v397 = vmul.f32 %v394, %v396
  %v398 = vadd.f32 %v394, %v397
  %vm399 = vweird.f32 %v393
  %vm400 = vweird.f32 %v394
  %vm401 = vmor %vm399, %vm400
  %v402 = vsel %vm401, %v394, %v398
  %v403 = vand.u32 2147483647, %v393
  %vm404 = vcmp.eq.f32.partialorder %v403, 8.507059e+37
  %v405 = vand.u32 %v393, 2147483648
  %v406 = vor.u32 1.1754944e-38, %v405
  %v407 = vsel %vm404, %v406, %v402
  %v408 = vmul.f32 1.0, %v407
  %v409 = vtanh.pop %v388
  %v410 = vmul.f32 %v408, %v356
  %412 = vrot.lane.b32.xlu0 %v409, 64
  %v413 = vpop.permute.xlu0 %412
  %v415 = vmul.f32 %v408, %v413
  %417 = vrot.lane.b32.xlu0 %v415, 32
  %v418 = vpop.permute.xlu0 %417
  %v420 = vadd.f32 %v410, %v418
  %v421 = vtanh.pop %v420
  %423 = vrot.lane.b32.xlu0 %v421, 64
  %v424 = vpop.permute.xlu0 %423
  %v426 = vmul.f32 %v408, %v424
  %s427 = scalar_lea.vmem [#allocation2], 40
  %v428 = vld [vmem:[%s427] sm:$0xff]
  %430 = vrot.lane.b32.xlu0 %v426, 32
  %v431 = vpop.permute.xlu0 %430
  %v432 = vsel %vm110, %v431, 0
  %434 = vmatpush.msra.mxu0 0.0
  %435 = vmatpush.msra.mxu0 0.0
  %436 = vmatpush.msra.mxu0 0.0
  %437 = vmatpush.msra.mxu0 0.0
  %438 = vmatpush.msra.mxu0 0.0
  %439 = vmatpush.msra.mxu0 0.0
  %440 = vmatpush.msra.mxu0 0.0
  %441 = vmatpush.msra.mxu0 0.0
  %442 = vmatpush.msra.mxu0 0.0
  %443 = vmatpush.msra.mxu0 0.0
  %444 = vmatpush.msra.mxu0 0.0
  %445 = vmatpush.msra.mxu0 0.0
  %446 = vmatpush.msra.mxu0 %v108
  %447 = vmatpush.msra.mxu0 %v107
  %448 = vmatpush.msra.mxu0 %v106
  %449 = vmatpush.msra.mxu0 %v105
  %450 = vmatmul.f32.gmra.mxu0 %v432
  %v451 = vpop.f32.mrf.mxu0
  %v452 = vadd.f32 %v428, %v451
  %453 = vdwg.mxu0
  %v454 = vxor.u32 %v452, 2147483648
  %v455 = vmul.f32 %v454, 1.442695
  %v456 = vpow.pop %v455
  %v457 = vadd.f32 %v456, 1.0
  %v458 = vrcp.pop %v457
  %v459 = vmul.f32 %v457, %v458
  %v460 = vsub.f32 1.0, %v459
  %v461 = vmul.f32 %v458, %v460
  %v462 = vadd.f32 %v458, %v461
  %vm463 = vweird.f32 %v457
  %vm464 = vweird.f32 %v458
  %vm465 = vmor %vm463, %vm464
  %v466 = vsel %vm465, %v458, %v462
  %v467 = vand.u32 2147483647, %v457
  %vm468 = vcmp.eq.f32.partialorder %v467, 8.507059e+37
  %v469 = vand.u32 %v457, 2147483648
  %v470 = vor.u32 1.1754944e-38, %v469
  %v471 = vsel %vm468, %v470, %v466
  %v472 = vmul.f32 1.0, %v471
  %v473 = vtanh.pop %v452
  %v474 = vmul.f32 %v472, %v420
  %476 = vrot.lane.b32.xlu0 %v473, 64
  %v477 = vpop.permute.xlu0 %476
  %v479 = vmul.f32 %v472, %v477
  %481 = vrot.lane.b32.xlu0 %v479, 32
  %v482 = vpop.permute.xlu0 %481
  %v484 = vadd.f32 %v474, %v482
  %v485 = vtanh.pop %v484
  %487 = vrot.lane.b32.xlu0 %v485, 64
  %v488 = vpop.permute.xlu0 %487
  %v490 = vmul.f32 %v472, %v488
  %s491 = scalar_lea.vmem [#allocation2], 48
  %v492 = vld [vmem:[%s491] sm:$0xff]
  %494 = vrot.lane.b32.xlu0 %v490, 32
  %v495 = vpop.permute.xlu0 %494
  %v496 = vsel %vm110, %v495, 0
  %498 = vmatpush.msra.mxu0 0.0
  %499 = vmatpush.msra.mxu0 0.0
  %500 = vmatpush.msra.mxu0 0.0
  %501 = vmatpush.msra.mxu0 0.0
  %502 = vmatpush.msra.mxu0 0.0
  %503 = vmatpush.msra.mxu0 0.0
  %504 = vmatpush.msra.mxu0 0.0
  %505 = vmatpush.msra.mxu0 0.0
  %506 = vmatpush.msra.mxu0 0.0
  %507 = vmatpush.msra.mxu0 0.0
  %508 = vmatpush.msra.mxu0 0.0
  %509 = vmatpush.msra.mxu0 0.0
  %510 = vmatpush.msra.mxu0 %v108
  %511 = vmatpush.msra.mxu0 %v107
  %512 = vmatpush.msra.mxu0 %v106
  %513 = vmatpush.msra.mxu0 %v105
  %514 = vmatmul.f32.gmra.mxu0 %v496
  %v515 = vpop.f32.mrf.mxu0
  %v516 = vadd.f32 %v492, %v515
  %517 = vdwg.mxu0
  %v518 = vxor.u32 %v516, 2147483648
  %v519 = vmul.f32 %v518, 1.442695
  %v520 = vpow.pop %v519
  %v521 = vadd.f32 %v520, 1.0
  %v522 = vrcp.pop %v521
  %v523 = vmul.f32 %v521, %v522
  %v524 = vsub.f32 1.0, %v523
  %v525 = vmul.f32 %v522, %v524
  %v526 = vadd.f32 %v522, %v525
  %vm527 = vweird.f32 %v521
  %vm528 = vweird.f32 %v522
  %vm529 = vmor %vm527, %vm528
  %v530 = vsel %vm529, %v522, %v526
  %v531 = vand.u32 2147483647, %v521
  %vm532 = vcmp.eq.f32.partialorder %v531, 8.507059e+37
  %v533 = vand.u32 %v521, 2147483648
  %v534 = vor.u32 1.1754944e-38, %v533
  %v535 = vsel %vm532, %v534, %v530
  %v536 = vmul.f32 1.0, %v535
  %v537 = vtanh.pop %v516
  %v538 = vmul.f32 %v536, %v484
  %540 = vrot.lane.b32.xlu0 %v537, 64
  %v541 = vpop.permute.xlu0 %540
  %v543 = vmul.f32 %v536, %v541
  %545 = vrot.lane.b32.xlu0 %v543, 32
  %v546 = vpop.permute.xlu0 %545
  %v548 = vadd.f32 %v538, %v546
  %v549 = vtanh.pop %v548
  %551 = vrot.lane.b32.xlu0 %v549, 64
  %v552 = vpop.permute.xlu0 %551
  %v554 = vmul.f32 %v536, %v552
  %s555 = scalar_lea.vmem [#allocation2], 56
  %v556 = vld [vmem:[%s555] sm:$0xff]
  %558 = vrot.lane.b32.xlu0 %v554, 32
  %v559 = vpop.permute.xlu0 %558
  %v560 = vsel %vm110, %v559, 0
  %562 = vmatpush.msra.mxu0 0.0
  %563 = vmatpush.msra.mxu0 0.0
  %564 = vmatpush.msra.mxu0 0.0
  %565 = vmatpush.msra.mxu0 0.0
  %566 = vmatpush.msra.mxu0 0.0
  %567 = vmatpush.msra.mxu0 0.0
  %568 = vmatpush.msra.mxu0 0.0
  %569 = vmatpush.msra.mxu0 0.0
  %570 = vmatpush.msra.mxu0 0.0
  %571 = vmatpush.msra.mxu0 0.0
  %572 = vmatpush.msra.mxu0 0.0
  %573 = vmatpush.msra.mxu0 0.0
  %574 = vmatpush.msra.mxu0 %v108
  %575 = vmatpush.msra.mxu0 %v107
  %576 = vmatpush.msra.mxu0 %v106
  %577 = vmatpush.msra.mxu0 %v105
  %578 = vmatmul.f32.gmra.mxu0 %v560
  %v579 = vpop.f32.mrf.mxu0
  %v580 = vadd.f32 %v556, %v579
  %581 = vdwg.mxu0
  %v582 = vxor.u32 %v580, 2147483648
  %v583 = vmul.f32 %v582, 1.442695
  %v584 = vpow.pop %v583
  %v585 = vadd.f32 %v584, 1.0
  %v586 = vrcp.pop %v585
  %v587 = vmul.f32 %v585, %v586
  %v588 = vsub.f32 1.0, %v587
  %v589 = vmul.f32 %v586, %v588
  %v590 = vadd.f32 %v586, %v589
  %vm591 = vweird.f32 %v585
  %vm592 = vweird.f32 %v586
  %vm593 = vmor %vm591, %vm592
  %v594 = vsel %vm593, %v586, %v590
  %v595 = vand.u32 2147483647, %v585
  %vm596 = vcmp.eq.f32.partialorder %v595, 8.507059e+37
  %v597 = vand.u32 %v585, 2147483648
  %v598 = vor.u32 1.1754944e-38, %v597
  %v599 = vsel %vm596, %v598, %v594
  %v600 = vmul.f32 1.0, %v599
  %v601 = vtanh.pop %v580
  %v602 = vmul.f32 %v600, %v548
  %604 = vrot.lane.b32.xlu0 %v601, 64
  %v605 = vpop.permute.xlu0 %604
  %v607 = vmul.f32 %v600, %v605
  %609 = vrot.lane.b32.xlu0 %v607, 32
  %v610 = vpop.permute.xlu0 %609
  %v612 = vadd.f32 %v602, %v610
  %v613 = vtanh.pop %v612
  %615 = vrot.lane.b32.xlu0 %v613, 64
  %v616 = vpop.permute.xlu0 %615
  %v618 = vmul.f32 %v600, %v616
  %v619 = vld [vmem:[%s4] sm:$0x1]
  %v621 = vperm.slane %v619, 0
  %622 = vrot.lane.b32.xlu0 %v621, 96
  %v623 = vpop.permute.xlu0 %622
  %v625 = vmul.f32 %v618, %v623
  %627 = vrot.lane.b32.xlu0 %v625, 32
  %v628 = vpop.permute.xlu0 %627
  %v630 = vsel %vm110, %v628, 0.0
  %631 = vadd.xlane.f32.xlu0 %v630
  %v632 = vpop.xlane.xlu0 %631
  %v633 = vld [vmem:[#allocation3] sm:$0x1]
  %v635 = vperm.slane %v633, 0
  %v637 = vadd.f32 %v632, %v635
  %vm638 = vcmask 7168
  %639 = vst.msk [vmem:[%s6] sm:$0xff] %vm638, %v637
  // Predicated region
  $region26: #{tpu_custom_call.1} parent=0 // pred_check
    _
  $region27: #{tpu_custom_call.1} parent=0 // pred_check_branch
    %641 = sbr.rel (0) target = $region29
  $region28: #{tpu_custom_call.1} parent=0 // pred_region
    _
  $region29: #{tpu_custom_call.1} parent=0 // pred_fallthru
    _
  // Predicated region
  $region30: #{tpu_custom_call.1} parent=0 // pred_check
    _
  $region31: #{tpu_custom_call.1} parent=0 // pred_check_branch
    %643 = sbr.rel (0) target = $region33
  $region32: #{tpu_custom_call.1} parent=0 // pred_region
    _
  $region33: #{tpu_custom_call.1} parent=0 // pred_fallthru
    _

</llo_original>
